<compile_context>
chip_gen: v5e
topology: v5e:2x2
jax: 0.10.0
libtpu: 0.0.40
codegen_flags: <defaults>
</compile_context>

<pallas_src>
import functools

import jax
import jax.numpy as jnp
from jax.experimental import pallas as pl
from jax.experimental.pallas import tpu as pltpu


_LANE = 128    # TPU lane width
_SUBLANE = 8   # f32 sublane width


def _round_up(x: int, m: int) -> int:
    return (x + m - 1) // m * m


def _head_kernel(x_ref, w1_ref, b1_ref, w2_ref, b2_ref, o_ref):
    # dropout is identity at inference time (PyTorch eval semantics).
    # torch does `x.float()` before dense; the default path keeps f32 parity
    # (weights are f32 unless the optional bf16 fast path is enabled).
    x = x_ref[...].astype(w1_ref.dtype)
    h = jnp.tanh(
        jnp.dot(x, w1_ref[...], preferred_element_type=jnp.float32) + b1_ref[...]
    )  # tanh lowers to the EUP slot (effectively free next to the MXU work)
    out = (
        jnp.dot(h.astype(w2_ref.dtype), w2_ref[...],
                preferred_element_type=jnp.float32)
        + b2_ref[...]
    )
    o_ref[...] = out.astype(o_ref.dtype)


def _vmem_capacity_bytes() -> int:
    """Physical per-core VMEM for this generation (conservative fallback)."""
    try:
        return int(pltpu.get_tpu_info().vmem_capacity_bytes)
    except Exception:
        return 64 << 20  # v7x per-TC VMEM; safe lower bound everywhere


def _choose_batch_tile(batch: int, block_batch: int, sub: int) -> int:
    """Batch tile: multiple of `sub` (or == batch), never larger than the
    batch, and yielding >= 2 grid steps when possible (v7x megacore)."""
    if batch <= sub:
        return batch
    floor = (batch // sub) * sub
    tb = min(_round_up(block_batch, sub), _round_up(batch, sub))
    if batch >= 2 * sub:
        tb = min(tb, _round_up(pl.cdiv(batch, 2), sub))
    return max(sub, min(tb, floor))


@functools.partial(jax.jit, static_argnames=("block_batch", "use_bf16_matmul"))
def prediction_classification(features, w1, b1, w2, b2, *,
                              block_batch=512, use_bf16_matmul=False):
    """features: [B, input_size]; w1: [input_size, H]; b1: [1, H];
       w2: [H, C]; b2: [1, C]  ->  logits [B, C] (float32)."""
    B, In = features.shape
    H = w1.shape[1]
    C = w2.shape[1]

    # --- Lane-dense output: pad the class dim of the (tiny) weights to 128
    #     lanes so output stores are unmasked full-lane vst. ---
    Cp = _round_up(C, _LANE)
    if Cp != C:
        w2 = jnp.pad(w2, ((0, 0), (0, Cp - C)))
        b2 = jnp.pad(b2, ((0, 0), (0, Cp - C)))

    if use_bf16_matmul:
        # Optional fast path; NOT bit-parity with torch's full-f32 Linear.
        w1 = w1.astype(jnp.bfloat16)
        w2 = w2.astype(jnp.bfloat16)

    # --- dtype-aware sublane alignment for the streamed feature tile. ---
    x_itemsize = jnp.dtype(features.dtype).itemsize
    sub = max(_SUBLANE, 32 // x_itemsize)          # 8 for f32, 16 for bf16

    TB = _choose_batch_tile(B, int(block_batch), sub)
    num_tiles = pl.cdiv(B, TB)   # ragged last tile handled by Pallas; no pad copy

    # --- VMEM budget: double-buffered streamed tiles + single-buffered
    #     resident weights + f32 temporaries, 1.5x margin, clamped to ~75%
    #     of this generation's physical VMEM. ---
    w_itemsize = jnp.dtype(w1.dtype).itemsize
    vmem_need = (
        2 * TB * In * x_itemsize                          # double-buffered x tiles
        + 2 * TB * Cp * 4                                 # double-buffered out tiles
        + (In * H + H * Cp) * w_itemsize + (H + Cp) * 4   # resident weights/biases
        + (TB * In + TB * H + TB * Cp) * 4                # in-kernel f32 temporaries
    )
    vmem_limit = int(min(max(int(1.5 * vmem_need), 8 << 20),
                         int(0.75 * _vmem_capacity_bytes())))

    cost = pl.CostEstimate(
        flops=2 * B * (In * H + H * Cp),
        transcendentals=B * H,
        bytes_accessed=(B * In * x_itemsize
                        + (In * H + H * Cp) * w_itemsize
                        + (H + Cp) * 4
                        + B * Cp * 4),
    )

    # Whole-array, single-buffered VMEM residency (DMA'd once, no pipelining).
    resident = pl.BlockSpec(memory_space=pltpu.MemorySpace.VMEM)

    grid_spec = pltpu.PrefetchScalarGridSpec(
        num_scalar_prefetch=0,
        grid=(num_tiles,),
        in_specs=[
            pl.BlockSpec((TB, In), lambda i: (i, 0)),   # streamed batch tile
            resident,                                   # w1
            resident,                                   # b1
            resident,                                   # w2 (lane-padded)
            resident,                                   # b2 (lane-padded)
        ],
        out_specs=pl.BlockSpec((TB, Cp), lambda i: (i, 0)),
    )

    out_padded = pl.pallas_call(
        _head_kernel,
        out_shape=jax.ShapeDtypeStruct((B, Cp), jnp.float32),
        grid_spec=grid_spec,
        compiler_params=pltpu.CompilerParams(
            dimension_semantics=("parallel",),  # shard batch tiles across v7x's 2 TCs
            vmem_limit_bytes=vmem_limit,
        ),
        cost_estimate=cost,
    )(features, w1, b1, w2, b2)

    return out_padded[:, :C]


if __name__ == "__main__":
    # Small shapes consistent with the module.
    batch, input_size, hidden_size, num_classes = 8, 32, 32, 2

    key = jax.random.PRNGKey(0)
    k_x, k_w1, k_b1, k_w2, k_b2 = jax.random.split(key, 5)

    features = jax.random.normal(k_x, (batch, input_size), dtype=jnp.float32)

    # Deterministic "Linear" parameters; stored as [in, out] (transposed vs torch).
    w1 = jax.random.normal(k_w1, (input_size, hidden_size), dtype=jnp.float32) * 0.05
    b1 = jax.random.normal(k_b1, (1, hidden_size), dtype=jnp.float32) * 0.01
    w2 = jax.random.normal(k_w2, (hidden_size, num_classes), dtype=jnp.float32) * 0.05
    b2 = jax.random.normal(k_b2, (1, num_classes), dtype=jnp.float32) * 0.01

    out = prediction_classification(features, w1, b1, w2, b2)
    jax.block_until_ready(out)

    # Reference check in plain JAX.
    ref = jnp.tanh(features @ w1 + b1) @ w2 + b2
    assert out.shape == (batch, num_classes)
    assert jnp.allclose(out, ref, atol=1e-5, rtol=1e-5)

    # TODO(synk): dropout is treated as identity (inference mode); training-time
    # stochastic masking via pltpu.prng_random_bits is not emitted here.
    print("KERNEL_OK")
</pallas_src>

<mosaic_0001>
module attributes {stable_mosaic.version = 11 : i64} {
  func.func @_head_kernel(%arg0: i32, %arg1: memref<8x32xf32, #tpu.memory_space<vmem>>, %arg2: memref<32x32xf32, #tpu.memory_space<vmem>>, %arg3: memref<1x32xf32, #tpu.memory_space<vmem>>, %arg4: memref<32x128xf32, #tpu.memory_space<vmem>>, %arg5: memref<1x128xf32, #tpu.memory_space<vmem>>, %arg6: memref<8x128xf32, #tpu.memory_space<vmem>>) attributes {dimension_semantics = [#tpu.dimension_semantics<parallel>], iteration_bounds = array<i64: 1>, scalar_prefetch = 0 : i64, scratch_operands = 0 : i64, tpu.core_type = #tpu.core_type<tc>, window_params = [{transform_indices = @transform_0, window_bounds = array<i64: 8, 32>}, {pipeline_mode = #tpu.pipeline_mode<synchronous>, transform_indices = @transform_1, window_bounds = array<i64: 32, 32>}, {pipeline_mode = #tpu.pipeline_mode<synchronous>, transform_indices = @transform_2, window_bounds = array<i64: 1, 32>}, {pipeline_mode = #tpu.pipeline_mode<synchronous>, transform_indices = @transform_3, window_bounds = array<i64: 32, 128>}, {pipeline_mode = #tpu.pipeline_mode<synchronous>, transform_indices = @transform_4, window_bounds = array<i64: 1, 128>}, {transform_indices = @transform_5, window_bounds = array<i64: 8, 128>}]} {
    %c0 = arith.constant 0 : index
    %c0_0 = arith.constant 0 : index
    %0 = vector.load %arg1[%c0, %c0_0] : memref<8x32xf32, #tpu.memory_space<vmem>>, vector<8x32xf32>
    %c0_1 = arith.constant 0 : index
    %c0_2 = arith.constant 0 : index
    %1 = vector.load %arg2[%c0_1, %c0_2] : memref<32x32xf32, #tpu.memory_space<vmem>>, vector<32x32xf32>
    %cst = arith.constant dense<0.000000e+00> : vector<8x32xf32>
    %2 = tpu.matmul %0, %1, %cst {dimension_numbers = #tpu.dot_dimension_numbers<[1], [0], [0], [1], [0, 0, 1, 1], [], []>} : vector<8x32xf32>, vector<32x32xf32>, vector<8x32xf32> -> vector<8x32xf32>
    %c0_3 = arith.constant 0 : index
    %c0_4 = arith.constant 0 : index
    %3 = vector.load %arg3[%c0_3, %c0_4] : memref<1x32xf32, #tpu.memory_space<vmem>>, vector<1x32xf32>
    %4 = vector.broadcast %3 : vector<1x32xf32> to vector<8x32xf32>
    %5 = arith.addf %2, %4 : vector<8x32xf32>
    %6 = math.tanh %5 : vector<8x32xf32>
    %c0_5 = arith.constant 0 : index
    %c0_6 = arith.constant 0 : index
    %7 = vector.load %arg4[%c0_5, %c0_6] : memref<32x128xf32, #tpu.memory_space<vmem>>, vector<32x128xf32>
    %cst_7 = arith.constant dense<0.000000e+00> : vector<8x128xf32>
    %8 = tpu.matmul %6, %7, %cst_7 {dimension_numbers = #tpu.dot_dimension_numbers<[1], [0], [0], [1], [0, 0, 1, 1], [], []>} : vector<8x32xf32>, vector<32x128xf32>, vector<8x128xf32> -> vector<8x128xf32>
    %c0_8 = arith.constant 0 : index
    %c0_9 = arith.constant 0 : index
    %9 = vector.load %arg5[%c0_8, %c0_9] : memref<1x128xf32, #tpu.memory_space<vmem>>, vector<1x128xf32>
    %10 = vector.broadcast %9 : vector<1x128xf32> to vector<8x128xf32>
    %11 = arith.addf %8, %10 : vector<8x128xf32>
    %c0_10 = arith.constant 0 : index
    %c0_11 = arith.constant 0 : index
    %12 = vector.load %arg6[%c0_10, %c0_11] : memref<8x128xf32, #tpu.memory_space<vmem>>, vector<8x128xf32>
    tpu.vector_store %arg6[%c0_10, %c0_11], %11 {strides = array<i32>} : memref<8x128xf32, #tpu.memory_space<vmem>>, vector<8x128xf32>,
    return
  }
  func.func @transform_0(%arg0: i32) -> (i32, i32) {
    %c0_i32 = arith.constant 0 : i32
    %c0_i32_0 = arith.constant 0 : i32
    return %arg0, %c0_i32 : i32, i32
  }
  func.func @transform_1(%arg0: i32) -> (i32, i32) {
    %c0_i32 = arith.constant 0 : i32
    %c0_i32_0 = arith.constant 0 : i32
    %c0_i32_1 = arith.constant 0 : i32
    return %c0_i32, %c0_i32_0 : i32, i32
  }
  func.func @transform_2(%arg0: i32) -> (i32, i32) {
    %c0_i32 = arith.constant 0 : i32
    %c0_i32_0 = arith.constant 0 : i32
    %c0_i32_1 = arith.constant 0 : i32
    return %c0_i32, %c0_i32_0 : i32, i32
  }
  func.func @transform_3(%arg0: i32) -> (i32, i32) {
    %c0_i32 = arith.constant 0 : i32
    %c0_i32_0 = arith.constant 0 : i32
    %c0_i32_1 = arith.constant 0 : i32
    return %c0_i32, %c0_i32_0 : i32, i32
  }
  func.func @transform_4(%arg0: i32) -> (i32, i32) {
    %c0_i32 = arith.constant 0 : i32
    %c0_i32_0 = arith.constant 0 : i32
    %c0_i32_1 = arith.constant 0 : i32
    return %c0_i32, %c0_i32_0 : i32, i32
  }
  func.func @transform_5(%arg0: i32) -> (i32, i32) {
    %c0_i32 = arith.constant 0 : i32
    %c0_i32_0 = arith.constant 0 : i32
    return %arg0, %c0_i32 : i32, i32
  }
}

</mosaic_0001>

<llo_original>
// kernel: prediction_classification.1
$region0: #{prediction_classification.1}
  #allocation0 [shape = 'u32[]', space=smem, size = 0x4, offset = 0x4, fixed_abs, tag = 'smem constant byte address 0x4 - core index']
  #allocation1 [shape = 'u32[72,128]{1,0:T(1,128)}', space=vmem, size = 0x9000, scoped, tag = 'internal scratch']
  %s0 = inlined_call_operand.vmem [shape: f32[8,32], index: 0, kind: input, shape index: {}]
  %s1 = inlined_call_operand.vmem [shape: f32[32,32], index: 1, kind: input, shape index: {}]
  %s2 = inlined_call_operand.vmem [shape: f32[1,32], index: 2, kind: input, shape index: {}]
  %s3 = inlined_call_operand.vmem [shape: f32[32,128], index: 3, kind: input, shape index: {}]
  %s4 = inlined_call_operand.vmem [shape: f32[1,128], index: 4, kind: input, shape index: {}]
  %s5 = inlined_call_operand.vmem [shape: f32[8,128], index: 5, kind: output, shape index: {}]
  %s6 = sld [smem:[#allocation0]]
  $region30: #{prediction_classification.1} parent=0
    _
  %s8 = ssub.s32 1, %s6
  %s9 = scalar_select 0, %s8, %s6
  // Predicated region
  $region2: #{prediction_classification.1} parent=0 // pred_check
    _
  $region3: #{prediction_classification.1} parent=0 // pred_check_branch
    %11 = sbr.rel (0) target = $region5
  $region4: #{prediction_classification.1} parent=0 // pred_region
    _
  $region5: #{prediction_classification.1} parent=0 // pred_fallthru
    _
  // Predicated region
  $region6: #{prediction_classification.1} parent=0 // pred_check
    _
  $region7: #{prediction_classification.1} parent=0 // pred_check_branch
    %13 = sbr.rel (0) target = $region9
  $region8: #{prediction_classification.1} parent=0 // pred_region
    _
  $region9: #{prediction_classification.1} parent=0 // pred_fallthru
    _
  // Predicated region
  $region10: #{prediction_classification.1} parent=0 // pred_check
    _
  $region11: #{prediction_classification.1} parent=0 // pred_check_branch
    %15 = sbr.rel (0) target = $region13
  $region12: #{prediction_classification.1} parent=0 // pred_region
    _
  $region13: #{prediction_classification.1} parent=0 // pred_fallthru
    _
  // Predicated region
  $region14: #{prediction_classification.1} parent=0 // pred_check
    _
  $region15: #{prediction_classification.1} parent=0 // pred_check_branch
    %17 = sbr.rel (0) target = $region17
  $region16: #{prediction_classification.1} parent=0 // pred_region
    _
  $region17: #{prediction_classification.1} parent=0 // pred_fallthru
    _
  // Predicated region
  $region18: #{prediction_classification.1} parent=0 // pred_check
    _
  $region19: #{prediction_classification.1} parent=0 // pred_check_branch
    %19 = sbr.rel (0) target = $region21
  $region20: #{prediction_classification.1} parent=0 // pred_region
    _
  $region21: #{prediction_classification.1} parent=0 // pred_fallthru
    _
  %v20 = vld [vmem:[%s0] sm:$0xff]
  %v21 = vld [vmem:[%s1] sm:$0xff]
  %v22 = vld [vmem:[%s1 + $0x8] sm:$0xff]
  %v23 = vld [vmem:[%s1 + $0x10] sm:$0xff]
  %v24 = vld [vmem:[%s1 + $0x18] sm:$0xff]
  %v25 = vld [vmem:[%s2] sm:$0x1]
  %v27 = vperm.slane %v25, 0
  %vm29 = vcmask 261120
  %v31 = vsel %vm29, %v20, 0
  %33 = vmatpush.msra.mxu0 0.0
  %34 = vmatpush.msra.mxu0 0.0
  %35 = vmatpush.msra.mxu0 0.0
  %36 = vmatpush.msra.mxu0 0.0
  %37 = vmatpush.msra.mxu0 0.0
  %38 = vmatpush.msra.mxu0 0.0
  %39 = vmatpush.msra.mxu0 0.0
  %40 = vmatpush.msra.mxu0 0.0
  %41 = vmatpush.msra.mxu0 0.0
  %42 = vmatpush.msra.mxu0 0.0
  %43 = vmatpush.msra.mxu0 0.0
  %44 = vmatpush.msra.mxu0 0.0
  %45 = vmatpush.msra.mxu0 %v24
  %46 = vmatpush.msra.mxu0 %v23
  %47 = vmatpush.msra.mxu0 %v22
  %48 = vmatpush.msra.mxu0 %v21
  %49 = vmatmul.f32.gmra.mxu0 %v31
  %v50 = vpop.f32.mrf.mxu0
  %v51 = vadd.f32 %v27, %v50
  %52 = vdwg.mxu0
  %v53 = vtanh.pop %v51
  %v54 = vld [vmem:[%s3] sm:$0xff]
  %v55 = vld [vmem:[%s3 + $0x8] sm:$0xff]
  %v56 = vld [vmem:[%s3 + $0x10] sm:$0xff]
  %v57 = vld [vmem:[%s3 + $0x18] sm:$0xff]
  %v58 = vld [vmem:[%s4] sm:$0x1]
  %v60 = vperm.slane %v58, 0
  %v63 = vsel %vm29, %v53, 0
  %65 = vmatpush.msra.mxu0 0.0
  %66 = vmatpush.msra.mxu0 0.0
  %67 = vmatpush.msra.mxu0 0.0
  %68 = vmatpush.msra.mxu0 0.0
  %69 = vmatpush.msra.mxu0 0.0
  %70 = vmatpush.msra.mxu0 0.0
  %71 = vmatpush.msra.mxu0 0.0
  %72 = vmatpush.msra.mxu0 0.0
  %73 = vmatpush.msra.mxu0 0.0
  %74 = vmatpush.msra.mxu0 0.0
  %75 = vmatpush.msra.mxu0 0.0
  %76 = vmatpush.msra.mxu0 0.0
  %77 = vmatpush.msra.mxu0 %v57
  %78 = vmatpush.msra.mxu0 %v56
  %79 = vmatpush.msra.mxu0 %v55
  %80 = vmatpush.msra.mxu0 %v54
  %81 = vmatmul.f32.gmra.mxu0 %v63
  %v82 = vpop.f32.mrf.mxu0
  %v83 = vadd.f32 %v60, %v82
  %84 = vdwg.mxu0
  %85 = vst [vmem:[%s5] sm:$0xff] %v83
  // Predicated region
  $region22: #{prediction_classification.1} parent=0 // pred_check
    _
  $region23: #{prediction_classification.1} parent=0 // pred_check_branch
    %87 = sbr.rel (0) target = $region25
  $region24: #{prediction_classification.1} parent=0 // pred_region
    _
  $region25: #{prediction_classification.1} parent=0 // pred_fallthru
    _
  // Predicated region
  $region26: #{prediction_classification.1} parent=0 // pred_check
    _
  $region27: #{prediction_classification.1} parent=0 // pred_check_branch
    %89 = sbr.rel (0) target = $region29
  $region28: #{prediction_classification.1} parent=0 // pred_region
    _
  $region29: #{prediction_classification.1} parent=0 // pred_fallthru
    _

</llo_original>
